<compile_context>
chip_gen: v7x
topology: tpu7x:2x2x1
jax: 0.10.0
libtpu: 0.0.40
codegen_flags: <defaults>
</compile_context>

<pallas_src>
import functools

import jax
import jax.numpy as jnp
from jax.experimental import pallas as pl
from jax.experimental.pallas import tpu as pltpu

_LANE = 128
_SUBLANE = 8


def _cdiv(a, b):
    return (a + b - 1) // b


def _round_up(a, b):
    return _cdiv(a, b) * b


def _tc_info():
    """Best-effort (num_tensorcores_per_device, is_v7x) from the device kind."""
    try:
        kind = jax.devices()[0].device_kind.lower()
    except Exception:
        return 1, False
    is_v7 = "v7" in kind
    multi_tc = is_v7 or ("v4" in kind) or ("v5p" in kind)
    return (2 if multi_tc else 1), is_v7


def _default_rows_per_tile(packing):
    """Per-generation tile sizing (rows of 128 lanes), in native-dtype rows."""
    try:
        kind = jax.devices()[0].device_kind.lower()
    except Exception:
        kind = ""
    if "v7" in kind or "v6" in kind:
        base = 8192   # 4 MiB/tile/input (f32); 2 in x 2 buf = 16 MiB < 32 MiB scoped
    elif "v5 lite" in kind or "v5e" in kind:
        base = 4096   # 8 MiB of double-buffered inputs < v5e's 16 MiB scoped default
    else:
        base = 2048   # conservative for unknown / older chips
    return base * packing


def _mse_partial_kernel(x_ref, y_ref, o_ref, *, valid_rows, need_mask):
    """Accumulate (8, 128) per-lane partial sums of (x - y)^2 into o_ref.

    Grid = (chunk, tile).  The output block index depends only on `chunk`, so
    the tiny (8, 128) f32 output block stays VMEM-resident across the inner
    'arbitrary' tile axis and is written back to HBM once per chunk.
    """
    s = pl.program_id(1)

    @pl.when(s == 0)
    def _init():
        o_ref[...] = jnp.zeros_like(o_ref)

    d = x_ref[...].astype(jnp.float32) - y_ref[...].astype(jnp.float32)
    sq = d * d
    tile_rows = x_ref.shape[0]

    def _accum(vals):
        # (tile_rows,128) -> (tile_rows//8, 8, 128) stays inside native (8,128)
        # tiles, so the axis-0 reduce is plain vreg-to-vreg VPU adds (no XLU).
        o_ref[...] += vals.reshape(-1, _SUBLANE, _LANE).sum(axis=0)

    if need_mask:
        tile_idx = pl.program_id(0) * pl.num_programs(1) + s
        is_edge = (tile_idx + 1) * tile_rows > valid_rows

        @pl.when(jnp.logical_not(is_edge))
        def _fast():
            _accum(sq)

        @pl.when(is_edge)
        def _masked():
            row_idx = tile_idx * tile_rows + jax.lax.broadcasted_iota(
                jnp.int32, sq.shape, 0
            )
            # Select (not multiply) so garbage (possibly NaN/inf) rows past the
            # logical end of the slab can never leak into the sum.
            _accum(jnp.where(row_idx < valid_rows, sq, 0.0))
    else:
        _accum(sq)


def ae_loss_fn(output, target, *, rows_per_tile=None):
    """Equivalent of AELossFn.forward: mean((output - target)**2) -> f32 scalar."""
    assert output.shape == target.shape, "output/target shapes must match"
    n = output.size
    if n == 0:
        return jnp.float32(jnp.nan)

    x = output.reshape(-1)
    y = target.reshape(-1)

    # Ragged tail (n % 128 != 0): handle the <128-element remainder with a tiny
    # plain-JAX op instead of a full-tensor pad copy; the kernel streams only
    # the lane-aligned prefix.  Common case (128 | n): zero extra work.
    rem = n % _LANE
    tail_sum = None
    if rem:
        xt = jax.lax.slice(x, (n - rem,), (n,)).astype(jnp.float32)
        yt = jax.lax.slice(y, (n - rem,), (n,)).astype(jnp.float32)
        tail_sum = jnp.sum((xt - yt) * (xt - yt))
        if n == rem:  # fewer than 128 elements total: no kernel needed
            return tail_sum / jnp.float32(n)
        x = jax.lax.slice(x, (0,), (n - rem,))
        y = jax.lax.slice(y, (0,), (n - rem,))

    rows = x.shape[0] // _LANE
    x2 = x.reshape(rows, _LANE)
    y2 = y.reshape(rows, _LANE)

    # Native packed sublane tile: 8 rows (f32), 16 (bf16/f16), 32 (int8/fp8).
    packing = max(1, 4 // jnp.dtype(output.dtype).itemsize)
    sublane = _SUBLANE * packing

    if rows_per_tile is None:
        rows_per_tile = _default_rows_per_tile(packing)

    if rows <= rows_per_tile:
        tile_rows = _round_up(rows, sublane)            # single tile
    else:
        tile_rows = max(sublane, (rows_per_tile // sublane) * sublane)

    total_tiles = _cdiv(rows, tile_rows)

    # Two independent chunks (leading grid axis) only on dual-TensorCore chips
    # so the streaming reduction can be split across cores; single-TC chips
    # keep one chunk (no overshoot re-read, half the partials).
    num_tc, is_v7 = _tc_info()
    n_chunks = 2 if (num_tc >= 2 and total_tiles >= 2) else 1
    tiles_per_chunk = _cdiv(total_tiles, n_chunks)
    overshoot = n_chunks * tiles_per_chunk != total_tiles
    need_mask = (rows % tile_rows != 0) or overshoot

    if overshoot:
        # The single overshoot step is clamped onto the last real tile; its
        # contribution is fully masked inside the kernel.
        def in_map(c, s):
            return (jnp.minimum(c * tiles_per_chunk + s, total_tiles - 1), 0)
    else:
        def in_map(c, s):
            return (c * tiles_per_chunk + s, 0)

    if n_chunks == 2:
        # CORE_PARALLEL is what actually shards the grid axis across the two
        # TensorCores on v7x; plain PARALLEL for older megacore chips.
        chunk_sem = pltpu.CORE_PARALLEL if is_v7 else pltpu.PARALLEL
    else:
        chunk_sem = pltpu.ARBITRARY

    partials = pl.pallas_call(
        functools.partial(
            _mse_partial_kernel, valid_rows=rows, need_mask=need_mask
        ),
        out_shape=jax.ShapeDtypeStruct((n_chunks * _SUBLANE, _LANE), jnp.float32),
        grid_spec=pltpu.PrefetchScalarGridSpec(
            num_scalar_prefetch=0,
            grid=(n_chunks, tiles_per_chunk),
            in_specs=[
                pl.BlockSpec((tile_rows, _LANE), in_map),
                pl.BlockSpec((tile_rows, _LANE), in_map),
            ],
            out_specs=pl.BlockSpec((_SUBLANE, _LANE), lambda c, s: (c, 0)),
        ),
        compiler_params=pltpu.CompilerParams(
            dimension_semantics=(chunk_sem, pltpu.ARBITRARY),
        ),
    )(x2, y2)

    # Tiny epilogue: at most (16, 128) f32 = 8 KiB of partials.
    total = jnp.sum(partials)
    if tail_sum is not None:
        total = total + tail_sum
    return total / jnp.float32(n)


if __name__ == "__main__":
    key = jax.random.PRNGKey(0)
    k1, k2 = jax.random.split(key)
    # Small NCHW autoencoder-style shapes: batch=2, channels=4, 16x16 spatial.
    output = jax.random.normal(k1, (2, 4, 16, 16), dtype=jnp.float32)
    target = jax.random.normal(k2, (2, 4, 16, 16), dtype=jnp.float32)

    loss_fn = jax.jit(ae_loss_fn)
    loss = jax.block_until_ready(loss_fn(output, target))

    # Sanity check against plain-JAX reference (same semantics as nn.MSELoss).
    ref = jnp.mean((output - target) ** 2)
    assert jnp.allclose(loss, ref, rtol=1e-5, atol=1e-6), (loss, ref)

    print("KERNEL_OK")
</pallas_src>

<mosaic_0001>
module attributes {stable_mosaic.version = 11 : i64} {
  func.func @_mse_partial_kernel(%arg0: i32, %arg1: i32, %arg2: memref<16x128xf32, #tpu.memory_space<vmem>>, %arg3: memref<16x128xf32, #tpu.memory_space<vmem>>, %arg4: memref<8x128xf32, #tpu.memory_space<vmem>>) attributes {dimension_semantics = [#tpu.dimension_semantics<arbitrary>, #tpu.dimension_semantics<arbitrary>], iteration_bounds = array<i64: 1, 1>, scalar_prefetch = 0 : i64, scratch_operands = 0 : i64, tpu.core_type = #tpu.core_type<tc>, window_params = [{transform_indices = @transform_0, window_bounds = array<i64: 16, 128>}, {transform_indices = @transform_1, window_bounds = array<i64: 16, 128>}, {transform_indices = @transform_2, window_bounds = array<i64: 8, 128>}]} {
    %c0_i32 = arith.constant 0 : i32
    %0 = arith.cmpi eq, %arg1, %c0_i32 : i32
    %1 = arith.extui %0 : i1 to i32
    %c0_i32_0 = arith.constant 0 : i32
    %2 = arith.cmpi ne, %1, %c0_i32_0 : i32
    scf.if %2 {
      %cst_8 = arith.constant 0.000000e+00 : f32
      %12 = vector.broadcast %cst_8 : f32 to vector<8x128xf32>
      %c0_9 = arith.constant 0 : index
      %c0_10 = arith.constant 0 : index
      %13 = vector.load %arg4[%c0_9, %c0_10] : memref<8x128xf32, #tpu.memory_space<vmem>>, vector<8x128xf32>
      tpu.vector_store %arg4[%c0_9, %c0_10], %12 {strides = array<i32>} : memref<8x128xf32, #tpu.memory_space<vmem>>, vector<8x128xf32>,
    } else {
    }
    %c0 = arith.constant 0 : index
    %c0_1 = arith.constant 0 : index
    %3 = vector.load %arg2[%c0, %c0_1] : memref<16x128xf32, #tpu.memory_space<vmem>>, vector<16x128xf32>
    %c0_2 = arith.constant 0 : index
    %c0_3 = arith.constant 0 : index
    %4 = vector.load %arg3[%c0_2, %c0_3] : memref<16x128xf32, #tpu.memory_space<vmem>>, vector<16x128xf32>
    %5 = arith.subf %3, %4 : vector<16x128xf32>
    %6 = arith.mulf %5, %5 : vector<16x128xf32>
    %c0_4 = arith.constant 0 : index
    %c0_5 = arith.constant 0 : index
    %7 = vector.load %arg4[%c0_4, %c0_5] : memref<8x128xf32, #tpu.memory_space<vmem>>, vector<8x128xf32>
    %8 = vector.shape_cast %6 : vector<16x128xf32> to vector<2x8x128xf32>
    %cst = arith.constant dense<0.000000e+00> : vector<8x128xf32>
    %9 = vector.multi_reduction <add>, %8, %cst [0] : vector<2x8x128xf32> to vector<8x128xf32>
    %10 = arith.addf %7, %9 : vector<8x128xf32>
    %c0_6 = arith.constant 0 : index
    %c0_7 = arith.constant 0 : index
    %11 = vector.load %arg4[%c0_6, %c0_7] : memref<8x128xf32, #tpu.memory_space<vmem>>, vector<8x128xf32>
    tpu.vector_store %arg4[%c0_6, %c0_7], %10 {strides = array<i32>} : memref<8x128xf32, #tpu.memory_space<vmem>>, vector<8x128xf32>,
    return
  }
  func.func @transform_0(%arg0: i32, %arg1: i32) -> (i32, i32) {
    %c1_i32 = arith.constant 1 : i32
    %0 = arith.muli %arg0, %c1_i32 : i32
    %1 = arith.addi %0, %arg1 : i32
    %c0_i32 = arith.constant 0 : i32
    %c0_i32_0 = arith.constant 0 : i32
    return %1, %c0_i32 : i32, i32
  }
  func.func @transform_1(%arg0: i32, %arg1: i32) -> (i32, i32) {
    %c1_i32 = arith.constant 1 : i32
    %0 = arith.muli %arg0, %c1_i32 : i32
    %1 = arith.addi %0, %arg1 : i32
    %c0_i32 = arith.constant 0 : i32
    %c0_i32_0 = arith.constant 0 : i32
    return %1, %c0_i32 : i32, i32
  }
  func.func @transform_2(%arg0: i32, %arg1: i32) -> (i32, i32) {
    %c0_i32 = arith.constant 0 : i32
    %c0_i32_0 = arith.constant 0 : i32
    return %arg0, %c0_i32 : i32, i32
  }
}

</mosaic_0001>

<llo_original>
// kernel: ae_loss_fn.1
$region0: #{ae_loss_fn.1}
  #allocation0 [shape = 'u32[]', space=smem, size = 0x4, offset = 0x4, fixed_abs, tag = 'smem constant byte address 0x4 - core index']
  #allocation1 [shape = 'u32[144,128]{1,0:T(1,128)}', space=vmem, size = 0x12000, scoped, tag = 'internal scratch']
  %s0 = inlined_call_operand.vmem [shape: f32[16,128], index: 0, kind: input, shape index: {}]
  %s1 = inlined_call_operand.vmem [shape: f32[16,128], index: 1, kind: input, shape index: {}]
  %s2 = inlined_call_operand.vmem [shape: f32[8,128], index: 2, kind: output, shape index: {}]
  %s3 = sld [smem:[#allocation0]]
  $region22: #{ae_loss_fn.1} parent=0
    _
  %s5 = ssub.s32 1, %s3
  %s6 = scalar_select 0, %s5, %s3
  // Predicated region
  $region2: #{ae_loss_fn.1} parent=0 // pred_check
    _
  $region3: #{ae_loss_fn.1} parent=0 // pred_check_branch
    %8 = sbr.rel (0) target = $region5
  $region4: #{ae_loss_fn.1} parent=0 // pred_region
    %s9 = sadd.s32 0, 0
    %s10 = smul.u32 2, %s9
    %p11 = scmp.lt.s32.totalorder %s10, 1
    %s12 = scalar_select %p11, %s10, 1
    %s13 = smul.addr %s12, 8
    %s14 = scalar_lea.vmem %s0, %s13
    %s15 = sadd.s32 0, 0
    %s16 = smul.u32 2, %s15
  $region5: #{ae_loss_fn.1} parent=0 // pred_fallthru
    _
  // Predicated region
  $region6: #{ae_loss_fn.1} parent=0 // pred_check
    _
  $region7: #{ae_loss_fn.1} parent=0 // pred_check_branch
    %18 = sbr.rel (0) target = $region9
  $region8: #{ae_loss_fn.1} parent=0 // pred_region
    %s19 = sadd.s32 0, 0
    %s20 = smul.u32 2, %s19
    %p21 = scmp.lt.s32.totalorder %s20, 1
    %s22 = scalar_select %p21, %s20, 1
    %s23 = smul.addr %s22, 8
    %s24 = scalar_lea.vmem %s1, %s23
    %s25 = sadd.s32 0, 0
    %s26 = smul.u32 2, %s25
  $region9: #{ae_loss_fn.1} parent=0 // pred_fallthru
    _
  %s27 = sadd.s32 0, 0
  %s28 = smul.u32 2, %s27
  %p29 = scmp.lt.s32.totalorder %s28, 1
  %s30 = scalar_select %p29, %s28, 1
  %s31 = smul.addr %s30, 8
  %s32 = scalar_lea.vmem %s0, %s31
  %s33 = sadd.s32 0, 0
  %s34 = smul.u32 2, %s33
  %p35 = scmp.lt.s32.totalorder %s34, 1
  %s36 = scalar_select %p35, %s34, 1
  %s37 = smul.addr %s36, 8
  %s38 = scalar_lea.vmem %s1, %s37
  %s39 = sadd.s32 0, 0
  %s40 = smul.u32 2, %s39
  %p41 = scmp.lt.s32.totalorder %s40, 1
  %s42 = scalar_select %p41, %s40, 1
  %s43 = smul.addr %s42, 8
  %s44 = scalar_lea.vmem %s0, %s43
  %s45 = sadd.s32 0, 0
  %s46 = smul.u32 2, %s45
  %s47 = sadd.s32 0, 0
  %s48 = smul.u32 2, %s47
  %p49 = scmp.lt.s32.totalorder %s48, 1
  %s50 = scalar_select %p49, %s48, 1
  %s51 = smul.addr %s50, 8
  %s52 = scalar_lea.vmem %s1, %s51
  %s53 = sadd.s32 0, 0
  %s54 = smul.u32 2, %s53
  %p55 = scmp.eq.s32.totalorder 0, 0
  // Predicated region
  $region10: #{ae_loss_fn.1} parent=0 // pred_check
    %p56 = pneg %p55
  $region11: #{ae_loss_fn.1} parent=0 // pred_check_branch
    %58 = sbr.rel (%p56) target = $region13
  $region12: #{ae_loss_fn.1} parent=0 // pred_region
    %59 = vst [vmem:[%s2] sm:$0xff] 0.0
  $region13: #{ae_loss_fn.1} parent=0 // pred_fallthru
    _
  %v60 = vld [vmem:[%s44] sm:$0xff]
  %v61 = vld [vmem:[%s44 + $0x8] sm:$0xff]
  %v62 = vld [vmem:[%s52] sm:$0xff]
  %v63 = vld [vmem:[%s52 + $0x8] sm:$0xff]
  %v64 = vsub.f32 %v60, %v62
  %v65 = vsub.f32 %v61, %v63
  %v66 = vmul.f32 %v64, %v64
  %v67 = vmul.f32 %v65, %v65
  %v68 = vld [vmem:[%s2] sm:$0xff]
  %v69 = vadd.f32 %v66, %v67
  %v70 = vadd.f32 %v68, %v69
  %71 = vst [vmem:[%s2] sm:$0xff] %v70
  // Predicated region
  $region14: #{ae_loss_fn.1} parent=0 // pred_check
    _
  $region15: #{ae_loss_fn.1} parent=0 // pred_check_branch
    %73 = sbr.rel (0) target = $region17
  $region16: #{ae_loss_fn.1} parent=0 // pred_region
    _
  $region17: #{ae_loss_fn.1} parent=0 // pred_fallthru
    _
  // Predicated region
  $region18: #{ae_loss_fn.1} parent=0 // pred_check
    _
  $region19: #{ae_loss_fn.1} parent=0 // pred_check_branch
    %75 = sbr.rel (0) target = $region21
  $region20: #{ae_loss_fn.1} parent=0 // pred_region
    _
  $region21: #{ae_loss_fn.1} parent=0 // pred_fallthru
    _

</llo_original>
